<compile_context>
chip_gen: v6e
topology: v6e:2x2x1
jax: 0.10.0
libtpu: 0.0.40
codegen_flags: <defaults>
</compile_context>

<pallas_src>
import math
import numpy as np
import jax
import jax.numpy as jnp
from jax.experimental import pallas as pl
from jax.experimental.pallas import tpu as pltpu


# ----------------------------- Pallas kernel --------------------------------
def lcn_block_kernel(x_ref, w1_ref, b1_ref, g1_ref, be1_ref,
                     w2_ref, b2_ref, g2_ref, be2_ref, e_ref, a_ref, out_ref):
    eps = 1e-5

    x = x_ref[...]                       # (B, D) f32, lane-dense
    alpha = a_ref[0]                     # PReLU slope (SMEM scalar)
    E = e_ref[...]                       # (D, D) block-diagonal, each KxK block = 1/(B*K)

    def bn_prelu(y, g, be):
        # Lane-dense BatchNorm1d(J): column sums over the batch (VPU), then the
        # per-joint group reduce + broadcast via one small MXU matmul with E.
        col_sum = jnp.sum(y, axis=0, keepdims=True)         # (1, D)
        col_sumsq = jnp.sum(y * y, axis=0, keepdims=True)   # (1, D)
        mean = jnp.dot(col_sum, E, preferred_element_type=jnp.float32)     # (1, D) group mean, broadcast
        meansq = jnp.dot(col_sumsq, E, preferred_element_type=jnp.float32) # (1, D) group E[y^2]
        var = meansq - mean * mean                           # biased variance
        scale = jax.lax.rsqrt(var + eps) * g                 # fold gamma into the scale
        shift = be - mean * scale
        y = y * scale + shift                                # plain lane-aligned VPU FMA
        return jnp.where(y >= 0.0, y, alpha * y)             # PReLU

    # --- first LCN linear (MXU) + BN + PReLU ---
    y = jnp.dot(x, w1_ref[...], preferred_element_type=jnp.float32) + b1_ref[...]
    y = bn_prelu(y, g1_ref[...], be1_ref[...])
    # TODO(synk): nn.Dropout left as identity (deterministic / eval mode).

    # --- second LCN linear (MXU) + BN + PReLU ---
    y = jnp.dot(y, w2_ref[...], preferred_element_type=jnp.float32) + b2_ref[...]
    y = bn_prelu(y, g2_ref[...], be2_ref[...])

    # residual (out aliases x's HBM buffer; VMEM read of x happened above)
    out_ref[...] = x + y


def lcn_block_pallas(x, w1, b1, g1, be1, w2, b2, g2, be2, e, alpha):
    B, D = x.shape
    vmem = pl.BlockSpec(memory_space=pltpu.MemorySpace.VMEM)
    smem = pl.BlockSpec(memory_space=pltpu.MemorySpace.SMEM)
    return pl.pallas_call(
        lcn_block_kernel,
        out_shape=jax.ShapeDtypeStruct((B, D), jnp.float32),
        in_specs=[vmem, vmem, vmem, vmem, vmem,   # x, W1, b1, g1, be1
                  vmem, vmem, vmem, vmem,         # W2, b2, g2, be2
                  vmem,                           # E (group reduce/broadcast matrix)
                  smem],                          # alpha
        out_specs=vmem,
        input_output_aliases={0: 0},              # out reuses x's HBM buffer
    )(x, w1, b1, g1, be1, w2, b2, g2, be2, e, alpha)


# ----------------------------- parameter setup (glue) -----------------------
def make_skeleton_mask(J):
    # deterministic tridiagonal "adjacency" mask (J, J)
    m = np.zeros((J, J), np.float32)
    for i in range(J):
        for d in (-1, 0, 1):
            j = i + d
            if 0 <= j < J:
                m[i, j] = 1.0
    return m


def make_lcn_linear_params(key, mask, J, chn_in, chn_out):
    """Dense (out, in) weight built exactly like LCNLinear:
    full_mask = mask.repeat(chn_out, chn_in); a[full_mask > 0] = weight (row-major)."""
    full_mask = np.tile(mask, (chn_out, chn_in))             # (J*chn_out, J*chn_in)
    nz = np.flatnonzero(full_mask > 0)
    nnz = nz.size
    # kaiming_uniform_(a=sqrt(3)) on weight.reshape(-1, chn_out, chn_in)
    fan_in = chn_out * chn_in
    gain = math.sqrt(2.0 / (1.0 + 3.0))
    bound_w = math.sqrt(3.0) * gain / math.sqrt(fan_in)
    kw, kb = jax.random.split(key)
    weight = jax.random.uniform(kw, (nnz,), jnp.float32, -bound_w, bound_w)
    bound_b = 1.0 / math.sqrt(fan_in)
    bias = jax.random.uniform(kb, (J * chn_out,), jnp.float32, -bound_b, bound_b)
    a_flat = jnp.zeros(full_mask.size, jnp.float32).at[jnp.asarray(nz)].set(weight)
    a = a_flat.reshape(J * chn_out, J * chn_in)              # (out, in), as F.linear wants
    return a, bias


# ----------------------------- pure-JAX reference ----------------------------
def ref_forward(x, w1, b1, gJ1, beJ1, w2, b2, gJ2, beJ2, alpha, J, K):
    B, D = x.shape
    eps = 1e-5

    def bn(y, g, be):
        y3 = y.reshape(B, J, K)
        m = y3.mean(axis=(0, 2), keepdims=True)
        v = ((y3 - m) ** 2).mean(axis=(0, 2), keepdims=True)
        yn = (y3 - m) / jnp.sqrt(v + eps) * g.reshape(1, J, 1) + be.reshape(1, J, 1)
        return yn.reshape(B, D)

    def prelu(y):
        return jnp.where(y >= 0, y, alpha * y)

    y = prelu(bn(x @ w1 + b1, gJ1, beJ1))
    y = prelu(bn(y @ w2 + b2, gJ2, beJ2))
    return x + y


# ----------------------------- main ------------------------------------------
if __name__ == "__main__":
    # B=128 fills MXU rows and amortizes launch overhead (BN is whole-batch, so this
    # is also the semantically correct training-mode batch).
    B, J, K = 128, 16, 8
    D = J * K                 # 128 -> lane-aligned

    key = jax.random.PRNGKey(0)
    kx, k1, k2 = jax.random.split(key, 3)

    mask = make_skeleton_mask(J)
    A1, b1 = make_lcn_linear_params(k1, mask, J, K, K)   # (D, D), (D,)
    A2, b2 = make_lcn_linear_params(k2, mask, J, K, K)

    # kernel does x @ W  (W = A.T, since F.linear computes x @ A.T)
    W1 = jnp.asarray(A1).T
    W2 = jnp.asarray(A2).T
    b1v = b1.reshape(1, D)
    b2v = b2.reshape(1, D)

    # BatchNorm1d(J) fresh-init affine params (per-joint), then pre-expanded to (1, D)
    gJ1 = jnp.ones((J,), jnp.float32)
    beJ1 = jnp.zeros((J,), jnp.float32)
    gJ2 = jnp.ones((J,), jnp.float32)
    beJ2 = jnp.zeros((J,), jnp.float32)
    g1 = jnp.repeat(gJ1, K).reshape(1, D)
    be1 = jnp.repeat(beJ1, K).reshape(1, D)
    g2 = jnp.repeat(gJ2, K).reshape(1, D)
    be2 = jnp.repeat(beJ2, K).reshape(1, D)

    # Block-diagonal group reduce/broadcast matrix: (D, D), each KxK block = 1/(B*K).
    # col_sum @ E  ==  per-joint mean, already broadcast across that joint's K lanes.
    E = jnp.kron(jnp.eye(J, dtype=jnp.float32),
                 jnp.full((K, K), 1.0 / (B * K), jnp.float32))

    # nn.PReLU() default single parameter 0.25
    alpha = jnp.full((1,), 0.25, jnp.float32)

    x = jax.random.normal(kx, (B, D), jnp.float32)

    # Reference first: the kernel donates x's buffer via input_output_aliases.
    ref = ref_forward(x, W1, b1v, gJ1, beJ1, W2, b2v, gJ2, beJ2, 0.25, J, K)
    ref = jax.block_until_ready(ref)

    out = lcn_block_pallas(x, W1, b1v, g1, be1, W2, b2v, g2, be2, E, alpha)
    out = jax.block_until_ready(out)

    assert out.shape == (B, D)
    np.testing.assert_allclose(np.asarray(out), np.asarray(ref), rtol=1e-4, atol=1e-4)

    print("KERNEL_OK")
</pallas_src>

<mosaic_0001>
module attributes {stable_mosaic.version = 11 : i64} {
  func.func @lcn_block_kernel(%arg0: memref<128x128xf32, #tpu.memory_space<vmem>>, %arg1: memref<128x128xf32, #tpu.memory_space<vmem>>, %arg2: memref<1x128xf32, #tpu.memory_space<vmem>>, %arg3: memref<1x128xf32, #tpu.memory_space<vmem>>, %arg4: memref<1x128xf32, #tpu.memory_space<vmem>>, %arg5: memref<128x128xf32, #tpu.memory_space<vmem>>, %arg6: memref<1x128xf32, #tpu.memory_space<vmem>>, %arg7: memref<1x128xf32, #tpu.memory_space<vmem>>, %arg8: memref<1x128xf32, #tpu.memory_space<vmem>>, %arg9: memref<128x128xf32, #tpu.memory_space<vmem>>, %arg10: memref<1xf32, #tpu.memory_space<smem>>, %arg11: memref<128x128xf32, #tpu.memory_space<vmem>>) attributes {dimension_semantics = [], scalar_prefetch = 0 : i64, scratch_operands = 0 : i64, tpu.core_type = #tpu.core_type<tc>} {
    %c0 = arith.constant 0 : index
    %c0_0 = arith.constant 0 : index
    %0 = vector.load %arg0[%c0, %c0_0] : memref<128x128xf32, #tpu.memory_space<vmem>>, vector<128x128xf32>
    %c0_1 = arith.constant 0 : index
    %1 = memref.load %arg10[%c0_1] : memref<1xf32, #tpu.memory_space<smem>>
    %c0_2 = arith.constant 0 : index
    %c0_3 = arith.constant 0 : index
    %2 = vector.load %arg9[%c0_2, %c0_3] : memref<128x128xf32, #tpu.memory_space<vmem>>, vector<128x128xf32>
    %c0_4 = arith.constant 0 : index
    %c0_5 = arith.constant 0 : index
    %3 = vector.load %arg1[%c0_4, %c0_5] : memref<128x128xf32, #tpu.memory_space<vmem>>, vector<128x128xf32>
    %cst = arith.constant dense<0.000000e+00> : vector<128x128xf32>
    %4 = tpu.matmul %0, %3, %cst {dimension_numbers = #tpu.dot_dimension_numbers<[1], [0], [0], [1], [0, 0, 1, 1], [], []>} : vector<128x128xf32>, vector<128x128xf32>, vector<128x128xf32> -> vector<128x128xf32>
    %c0_6 = arith.constant 0 : index
    %c0_7 = arith.constant 0 : index
    %5 = vector.load %arg2[%c0_6, %c0_7] : memref<1x128xf32, #tpu.memory_space<vmem>>, vector<1x128xf32>
    %6 = vector.broadcast %5 : vector<1x128xf32> to vector<128x128xf32>
    %7 = arith.addf %4, %6 : vector<128x128xf32>
    %c0_8 = arith.constant 0 : index
    %c0_9 = arith.constant 0 : index
    %8 = vector.load %arg3[%c0_8, %c0_9] : memref<1x128xf32, #tpu.memory_space<vmem>>, vector<1x128xf32>
    %c0_10 = arith.constant 0 : index
    %c0_11 = arith.constant 0 : index
    %9 = vector.load %arg4[%c0_10, %c0_11] : memref<1x128xf32, #tpu.memory_space<vmem>>, vector<1x128xf32>
    %cst_12 = arith.constant dense<0.000000e+00> : vector<128xf32>
    %10 = vector.multi_reduction <add>, %7, %cst_12 [0] : vector<128x128xf32> to vector<128xf32>
    %11 = vector.shape_cast %10 : vector<128xf32> to vector<1x128xf32>
    %12 = arith.mulf %7, %7 : vector<128x128xf32>
    %cst_13 = arith.constant dense<0.000000e+00> : vector<128xf32>
    %13 = vector.multi_reduction <add>, %12, %cst_13 [0] : vector<128x128xf32> to vector<128xf32>
    %14 = vector.shape_cast %13 : vector<128xf32> to vector<1x128xf32>
    %cst_14 = arith.constant dense<0.000000e+00> : vector<1x128xf32>
    %15 = tpu.matmul %11, %2, %cst_14 {dimension_numbers = #tpu.dot_dimension_numbers<[1], [0], [0], [1], [0, 0, 1, 1], [], []>} : vector<1x128xf32>, vector<128x128xf32>, vector<1x128xf32> -> vector<1x128xf32>
    %cst_15 = arith.constant dense<0.000000e+00> : vector<1x128xf32>
    %16 = tpu.matmul %14, %2, %cst_15 {dimension_numbers = #tpu.dot_dimension_numbers<[1], [0], [0], [1], [0, 0, 1, 1], [], []>} : vector<1x128xf32>, vector<128x128xf32>, vector<1x128xf32> -> vector<1x128xf32>
    %17 = arith.mulf %15, %15 : vector<1x128xf32>
    %18 = arith.subf %16, %17 : vector<1x128xf32>
    %cst_16 = arith.constant 9.99999974E-6 : f32
    %19 = vector.broadcast %cst_16 : f32 to vector<1x128xf32>
    %20 = arith.addf %18, %19 : vector<1x128xf32>
    %21 = math.rsqrt %20 : vector<1x128xf32>
    %22 = arith.mulf %21, %8 : vector<1x128xf32>
    %23 = arith.mulf %15, %22 : vector<1x128xf32>
    %24 = arith.subf %9, %23 : vector<1x128xf32>
    %25 = vector.broadcast %22 : vector<1x128xf32> to vector<128x128xf32>
    %26 = arith.mulf %7, %25 : vector<128x128xf32>
    %27 = vector.broadcast %24 : vector<1x128xf32> to vector<128x128xf32>
    %28 = arith.addf %26, %27 : vector<128x128xf32>
    %cst_17 = arith.constant 0.000000e+00 : f32
    %29 = vector.broadcast %cst_17 : f32 to vector<128x128xf32>
    %30 = arith.cmpf oge, %28, %29 : vector<128x128xf32>
    %31 = vector.broadcast %1 : f32 to vector<128x128xf32>
    %32 = arith.mulf %31, %28 : vector<128x128xf32>
    %33 = arith.select %30, %28, %32 : vector<128x128xi1>, vector<128x128xf32>
    %c0_18 = arith.constant 0 : index
    %c0_19 = arith.constant 0 : index
    %34 = vector.load %arg5[%c0_18, %c0_19] : memref<128x128xf32, #tpu.memory_space<vmem>>, vector<128x128xf32>
    %cst_20 = arith.constant dense<0.000000e+00> : vector<128x128xf32>
    %35 = tpu.matmul %33, %34, %cst_20 {dimension_numbers = #tpu.dot_dimension_numbers<[1], [0], [0], [1], [0, 0, 1, 1], [], []>} : vector<128x128xf32>, vector<128x128xf32>, vector<128x128xf32> -> vector<128x128xf32>
    %c0_21 = arith.constant 0 : index
    %c0_22 = arith.constant 0 : index
    %36 = vector.load %arg6[%c0_21, %c0_22] : memref<1x128xf32, #tpu.memory_space<vmem>>, vector<1x128xf32>
    %37 = vector.broadcast %36 : vector<1x128xf32> to vector<128x128xf32>
    %38 = arith.addf %35, %37 : vector<128x128xf32>
    %c0_23 = arith.constant 0 : index
    %c0_24 = arith.constant 0 : index
    %39 = vector.load %arg7[%c0_23, %c0_24] : memref<1x128xf32, #tpu.memory_space<vmem>>, vector<1x128xf32>
    %c0_25 = arith.constant 0 : index
    %c0_26 = arith.constant 0 : index
    %40 = vector.load %arg8[%c0_25, %c0_26] : memref<1x128xf32, #tpu.memory_space<vmem>>, vector<1x128xf32>
    %cst_27 = arith.constant dense<0.000000e+00> : vector<128xf32>
    %41 = vector.multi_reduction <add>, %38, %cst_27 [0] : vector<128x128xf32> to vector<128xf32>
    %42 = vector.shape_cast %41 : vector<128xf32> to vector<1x128xf32>
    %43 = arith.mulf %38, %38 : vector<128x128xf32>
    %cst_28 = arith.constant dense<0.000000e+00> : vector<128xf32>
    %44 = vector.multi_reduction <add>, %43, %cst_28 [0] : vector<128x128xf32> to vector<128xf32>
    %45 = vector.shape_cast %44 : vector<128xf32> to vector<1x128xf32>
    %cst_29 = arith.constant dense<0.000000e+00> : vector<1x128xf32>
    %46 = tpu.matmul %42, %2, %cst_29 {dimension_numbers = #tpu.dot_dimension_numbers<[1], [0], [0], [1], [0, 0, 1, 1], [], []>} : vector<1x128xf32>, vector<128x128xf32>, vector<1x128xf32> -> vector<1x128xf32>
    %cst_30 = arith.constant dense<0.000000e+00> : vector<1x128xf32>
    %47 = tpu.matmul %45, %2, %cst_30 {dimension_numbers = #tpu.dot_dimension_numbers<[1], [0], [0], [1], [0, 0, 1, 1], [], []>} : vector<1x128xf32>, vector<128x128xf32>, vector<1x128xf32> -> vector<1x128xf32>
    %48 = arith.mulf %46, %46 : vector<1x128xf32>
    %49 = arith.subf %47, %48 : vector<1x128xf32>
    %cst_31 = arith.constant 9.99999974E-6 : f32
    %50 = vector.broadcast %cst_31 : f32 to vector<1x128xf32>
    %51 = arith.addf %49, %50 : vector<1x128xf32>
    %52 = math.rsqrt %51 : vector<1x128xf32>
    %53 = arith.mulf %52, %39 : vector<1x128xf32>
    %54 = arith.mulf %46, %53 : vector<1x128xf32>
    %55 = arith.subf %40, %54 : vector<1x128xf32>
    %56 = vector.broadcast %53 : vector<1x128xf32> to vector<128x128xf32>
    %57 = arith.mulf %38, %56 : vector<128x128xf32>
    %58 = vector.broadcast %55 : vector<1x128xf32> to vector<128x128xf32>
    %59 = arith.addf %57, %58 : vector<128x128xf32>
    %cst_32 = arith.constant 0.000000e+00 : f32
    %60 = vector.broadcast %cst_32 : f32 to vector<128x128xf32>
    %61 = arith.cmpf oge, %59, %60 : vector<128x128xf32>
    %62 = vector.broadcast %1 : f32 to vector<128x128xf32>
    %63 = arith.mulf %62, %59 : vector<128x128xf32>
    %64 = arith.select %61, %59, %63 : vector<128x128xi1>, vector<128x128xf32>
    %65 = arith.addf %0, %64 : vector<128x128xf32>
    %c0_33 = arith.constant 0 : index
    %c0_34 = arith.constant 0 : index
    %66 = vector.load %arg11[%c0_33, %c0_34] : memref<128x128xf32, #tpu.memory_space<vmem>>, vector<128x128xf32>
    tpu.vector_store %arg11[%c0_33, %c0_34], %65 {strides = array<i32>} : memref<128x128xf32, #tpu.memory_space<vmem>>, vector<128x128xf32>,
    return
  }
}

</mosaic_0001>

<llo_original>
// kernel: tpu_custom_call.1
$region0: #{tpu_custom_call.1}
  #allocation0 [shape = 'u32[]', space=smem, size = 0x4, offset = 0x4, fixed_abs, tag = 'smem constant byte address 0x4 - core index']
  #allocation1 [shape = 'u32[144,128]{1,0:T(1,128)}', space=vmem, size = 0x12000, scoped, tag = 'internal scratch']
  #allocation2 [shape = 'f32[1]{0:T(128)S(6)}', space=smem, size = 0x200, scoped, tag = 'scoped memory for tpu_custom_call.1']
  %s0 = inlined_call_operand.hbm [shape: f32[128,128], index: 0, kind: input, shape index: {}, may-alias: {0,11}]
  %s1 = inlined_call_operand.vmem [shape: f32[128,128], index: 1, kind: input, shape index: {}]
  %s2 = inlined_call_operand.vmem [shape: f32[1,128], index: 2, kind: input, shape index: {}]
  %s3 = inlined_call_operand.vmem [shape: f32[1,128], index: 3, kind: input, shape index: {}]
  %s4 = inlined_call_operand.vmem [shape: f32[1,128], index: 4, kind: input, shape index: {}]
  %s5 = inlined_call_operand.vmem [shape: f32[128,128], index: 5, kind: input, shape index: {}]
  %s6 = inlined_call_operand.vmem [shape: f32[1,128], index: 6, kind: input, shape index: {}]
  %s7 = inlined_call_operand.vmem [shape: f32[1,128], index: 7, kind: input, shape index: {}]
  %s8 = inlined_call_operand.vmem [shape: f32[1,128], index: 8, kind: input, shape index: {}]
  %s9 = inlined_call_operand.hbm [shape: f32[128,128], index: 9, kind: input, shape index: {}]
  %s10 = inlined_call_operand.<no memory space> [shape: f32[1], index: 10, kind: input, shape index: {}]
  %s11 = inlined_call_operand.hbm [shape: f32[128,128], index: 11, kind: output, shape index: {}, may-alias: {0,11}]
  %s12 = sld [smem:[#allocation0]]
  $region62: #{tpu_custom_call.1} parent=0
    _
  %s14 = ssub.s32 1, %s12
  %s15 = scalar_select 0, %s14, %s12
  %16 = sst [smem:[#allocation2]] %s10
  $region1: #{tpu_custom_call.1} parent=0
    #allocation3 [shape = 'u8[65536]{0}', space=vmem, size = 0x10000, scoped, tag = 'input window, operand 0, single buffered']
    #allocation4 [shape = 's32[1]{0}', space=sflag, size = 0x4, scoped, tag = 'scoped memory for tpu_custom_call.1']
    #allocation5 [shape = 's32[1]{0}', space=sflag, size = 0x4, scoped, tag = 'scoped memory for tpu_custom_call.1']
    #allocation6 [shape = 'u8[65536]{0}', space=vmem, size = 0x10000, scoped, tag = 'input window, operand 9, single buffered']
    #allocation7 [shape = 's32[1]{0}', space=sflag, size = 0x4, scoped, tag = 'scoped memory for tpu_custom_call.1']
    #allocation8 [shape = 'u8[65536]{0}', space=vmem, size = 0x10000, scoped, tag = 'output window, operand 0, single buffered']
    %17 = vsyncpa [#allocation4], 0
    %18 = vsyncpa [#allocation7], 0
    %19 = vsyncpa [#allocation5], 0
    // Predicated region
    $region2: #{tpu_custom_call.1} parent=1 // pred_check
      _
    $region3: #{tpu_custom_call.1} parent=1 // pred_check_branch
      %21 = sbr.rel (0) target = $region5
    $region4: #{tpu_custom_call.1} parent=1 // pred_region
      %s23 = ssub.s32 2048, 2048
      %24 = vsyncadd [#allocation4], %s23
      %s25 = sshll.u32 [#allocation3], 4
      %s26 = int_to_ptr.vmem [resolvable:$true] %s25
      %31 = dma.hbm_to_vmem [thread:$0]  %s0, 2048, %s26, [#allocation4], 128, 128, 8
    $region5: #{tpu_custom_call.1} parent=1 // pred_fallthru
      _
    // Predicated region
    $region6: #{tpu_custom_call.1} parent=1 // pred_check
      _
    $region7: #{tpu_custom_call.1} parent=1 // pred_check_branch
      %33 = sbr.rel (0) target = $region9
    $region8: #{tpu_custom_call.1} parent=1 // pred_region
      _
    $region9: #{tpu_custom_call.1} parent=1 // pred_fallthru
      _
    // Predicated region
    $region10: #{tpu_custom_call.1} parent=1 // pred_check
      _
    $region11: #{tpu_custom_call.1} parent=1 // pred_check_branch
      %35 = sbr.rel (0) target = $region13
    $region12: #{tpu_custom_call.1} parent=1 // pred_region
      _
    $region13: #{tpu_custom_call.1} parent=1 // pred_fallthru
      _
    // Predicated region
    $region14: #{tpu_custom_call.1} parent=1 // pred_check
      _
    $region15: #{tpu_custom_call.1} parent=1 // pred_check_branch
      %37 = sbr.rel (0) target = $region17
    $region16: #{tpu_custom_call.1} parent=1 // pred_region
      _
    $region17: #{tpu_custom_call.1} parent=1 // pred_fallthru
      _
    // Predicated region
    $region18: #{tpu_custom_call.1} parent=1 // pred_check
      _
    $region19: #{tpu_custom_call.1} parent=1 // pred_check_branch
      %39 = sbr.rel (0) target = $region21
    $region20: #{tpu_custom_call.1} parent=1 // pred_region
      _
    $region21: #{tpu_custom_call.1} parent=1 // pred_fallthru
      _
    // Predicated region
    $region22: #{tpu_custom_call.1} parent=1 // pred_check
      _
    $region23: #{tpu_custom_call.1} parent=1 // pred_check_branch
      %41 = sbr.rel (0) target = $region25
    $region24: #{tpu_custom_call.1} parent=1 // pred_region
      _
    $region25: #{tpu_custom_call.1} parent=1 // pred_fallthru
      _
    // Predicated region
    $region26: #{tpu_custom_call.1} parent=1 // pred_check
      _
    $region27: #{tpu_custom_call.1} parent=1 // pred_check_branch
      %43 = sbr.rel (0) target = $region29
    $region28: #{tpu_custom_call.1} parent=1 // pred_region
      _
    $region29: #{tpu_custom_call.1} parent=1 // pred_fallthru
      _
    // Predicated region
    $region30: #{tpu_custom_call.1} parent=1 // pred_check
      _
    $region31: #{tpu_custom_call.1} parent=1 // pred_check_branch
      %45 = sbr.rel (0) target = $region33
    $region32: #{tpu_custom_call.1} parent=1 // pred_region
      _
    $region33: #{tpu_custom_call.1} parent=1 // pred_fallthru
      _
    // Predicated region
    $region34: #{tpu_custom_call.1} parent=1 // pred_check
      _
    $region35: #{tpu_custom_call.1} parent=1 // pred_check_branch
      %47 = sbr.rel (0) target = $region37
    $region36: #{tpu_custom_call.1} parent=1 // pred_region
      _
    $region37: #{tpu_custom_call.1} parent=1 // pred_fallthru
      _
    // Predicated region
    $region38: #{tpu_custom_call.1} parent=1 // pred_check
      _
    $region39: #{tpu_custom_call.1} parent=1 // pred_check_branch
      %49 = sbr.rel (0) target = $region41
    $region40: #{tpu_custom_call.1} parent=1 // pred_region
      %s51 = ssub.s32 2048, 2048
      %52 = vsyncadd [#allocation7], %s51
      %s53 = sshll.u32 [#allocation6], 4
      %s54 = int_to_ptr.vmem [resolvable:$true] %s53
      %59 = dma.hbm_to_vmem [thread:$0]  %s9, 2048, %s54, [#allocation7], 128, 128, 8
    $region41: #{tpu_custom_call.1} parent=1 // pred_fallthru
      _
    // Predicated region
    $region42: #{tpu_custom_call.1} parent=1 // pred_check
      _
    $region43: #{tpu_custom_call.1} parent=1 // pred_check_branch
      %61 = sbr.rel (0) target = $region45
    $region44: #{tpu_custom_call.1} parent=1 // pred_region
      _
    $region45: #{tpu_custom_call.1} parent=1 // pred_fallthru
      _
    // Predicated region
    $region46: #{tpu_custom_call.1} parent=1 // pred_check
      _
    $region47: #{tpu_custom_call.1} parent=1 // pred_check_branch
      %63 = sbr.rel (0) target = $region49
    $region48: #{tpu_custom_call.1} parent=1 // pred_region
      %64 = dma.done [#allocation4], 2048
    $region49: #{tpu_custom_call.1} parent=1 // pred_fallthru
      _
    // Predicated region
    $region50: #{tpu_custom_call.1} parent=1 // pred_check
      _
    $region51: #{tpu_custom_call.1} parent=1 // pred_check_branch
      %66 = sbr.rel (0) target = $region53
    $region52: #{tpu_custom_call.1} parent=1 // pred_region
      %67 = dma.done [#allocation7], 2048
    $region53: #{tpu_custom_call.1} parent=1 // pred_fallthru
      _
    %v68 = vld [vmem:[#allocation3] sm:$0xff]
    %v69 = vld [vmem:[#allocation3 + $0x8] sm:$0xff]
    %v70 = vld [vmem:[#allocation3 + $0x10] sm:$0xff]
    %v71 = vld [vmem:[#allocation3 + $0x18] sm:$0xff]
    %v72 = vld [vmem:[#allocation3 + $0x20] sm:$0xff]
    %v73 = vld [vmem:[#allocation3 + $0x28] sm:$0xff]
    %v74 = vld [vmem:[#allocation3 + $0x30] sm:$0xff]
    %v75 = vld [vmem:[#allocation3 + $0x38] sm:$0xff]
    %v76 = vld [vmem:[#allocation3 + $0x40] sm:$0xff]
    %v77 = vld [vmem:[#allocation3 + $0x48] sm:$0xff]
    %v78 = vld [vmem:[#allocation3 + $0x50] sm:$0xff]
    %v79 = vld [vmem:[#allocation3 + $0x58] sm:$0xff]
    %v80 = vld [vmem:[#allocation3 + $0x60] sm:$0xff]
    %v81 = vld [vmem:[#allocation3 + $0x68] sm:$0xff]
    %v82 = vld [vmem:[#allocation3 + $0x70] sm:$0xff]
    %v83 = vld [vmem:[#allocation3 + $0x78] sm:$0xff]
    %s84 = sld [smem:[#allocation2]]
    %v85 = vld [vmem:[#allocation6] sm:$0xff]
    %v86 = vld [vmem:[#allocation6 + $0x8] sm:$0xff]
    %v87 = vld [vmem:[#allocation6 + $0x10] sm:$0xff]
    %v88 = vld [vmem:[#allocation6 + $0x18] sm:$0xff]
    %v89 = vld [vmem:[#allocation6 + $0x20] sm:$0xff]
    %v90 = vld [vmem:[#allocation6 + $0x28] sm:$0xff]
    %v91 = vld [vmem:[#allocation6 + $0x30] sm:$0xff]
    %v92 = vld [vmem:[#allocation6 + $0x38] sm:$0xff]
    %v93 = vld [vmem:[#allocation6 + $0x40] sm:$0xff]
    %v94 = vld [vmem:[#allocation6 + $0x48] sm:$0xff]
    %v95 = vld [vmem:[#allocation6 + $0x50] sm:$0xff]
    %v96 = vld [vmem:[#allocation6 + $0x58] sm:$0xff]
    %v97 = vld [vmem:[#allocation6 + $0x60] sm:$0xff]
    %v98 = vld [vmem:[#allocation6 + $0x68] sm:$0xff]
    %v99 = vld [vmem:[#allocation6 + $0x70] sm:$0xff]
    %v100 = vld [vmem:[#allocation6 + $0x78] sm:$0xff]
    %v101 = vld [vmem:[%s1] sm:$0xff]
    %v102 = vld [vmem:[%s1 + $0x8] sm:$0xff]
    %v103 = vld [vmem:[%s1 + $0x10] sm:$0xff]
    %v104 = vld [vmem:[%s1 + $0x18] sm:$0xff]
    %v105 = vld [vmem:[%s1 + $0x20] sm:$0xff]
    %v106 = vld [vmem:[%s1 + $0x28] sm:$0xff]
    %v107 = vld [vmem:[%s1 + $0x30] sm:$0xff]
    %v108 = vld [vmem:[%s1 + $0x38] sm:$0xff]
    %v109 = vld [vmem:[%s1 + $0x40] sm:$0xff]
    %v110 = vld [vmem:[%s1 + $0x48] sm:$0xff]
    %v111 = vld [vmem:[%s1 + $0x50] sm:$0xff]
    %v112 = vld [vmem:[%s1 + $0x58] sm:$0xff]
    %v113 = vld [vmem:[%s1 + $0x60] sm:$0xff]
    %v114 = vld [vmem:[%s1 + $0x68] sm:$0xff]
    %v115 = vld [vmem:[%s1 + $0x70] sm:$0xff]
    %v116 = vld [vmem:[%s1 + $0x78] sm:$0xff]
    %v117 = vld [vmem:[%s2] sm:$0x1]
    %v119 = vlaneseq
    %v120 = vshrl.u32 %v119, 7
    %v121 = vsub.s32 0, %v120
    %v122 = vrot.slane %v117, %v121
    %124 = vmatprep.subr.mxu0 0.0
    %125 = vmatpush1.msra.mxu0 %v116
    %126 = vmatprep.subr.mxu0 0.0
    %127 = vmatpush1.msra.mxu0 %v115
    %128 = vmatprep.subr.mxu0 0.0
    %129 = vmatpush1.msra.mxu0 %v114
    %130 = vmatprep.subr.mxu0 0.0
    %131 = vmatpush1.msra.mxu0 %v113
    %132 = vmatprep.subr.mxu0 0.0
    %133 = vmatpush1.msra.mxu0 %v112
    %134 = vmatprep.subr.mxu0 0.0
    %135 = vmatpush1.msra.mxu0 %v111
    %136 = vmatprep.subr.mxu0 0.0
    %137 = vmatpush1.msra.mxu0 %v110
    %138 = vmatprep.subr.mxu0 0.0
    %139 = vmatpush1.msra.mxu0 %v109
    %140 = vmatprep.subr.mxu0 0.0
    %141 = vmatpush1.msra.mxu0 %v108
    %142 = vmatprep.subr.mxu0 0.0
    %143 = vmatpush1.msra.mxu0 %v107
    %144 = vmatprep.subr.mxu0 0.0
    %145 = vmatpush1.msra.mxu0 %v106
    %146 = vmatprep.subr.mxu0 0.0
    %147 = vmatpush1.msra.mxu0 %v105
    %148 = vmatprep.subr.mxu0 0.0
    %149 = vmatpush1.msra.mxu0 %v104
    %150 = vmatprep.subr.mxu0 0.0
    %151 = vmatpush1.msra.mxu0 %v103
    %152 = vmatprep.subr.mxu0 0.0
    %153 = vmatpush1.msra.mxu0 %v102
    %154 = vmatprep.subr.mxu0 0.0
    %155 = vmatpush1.msra.mxu0 %v101
    %156 = vmatprep.subr.mxu0 0.0
    %157 = vmatpush2.msra.mxu0 0.0
    %158 = vmatprep.subr.mxu0 0.0
    %159 = vmatpush2.msra.mxu0 0.0
    %160 = vmatprep.subr.mxu0 0.0
    %161 = vmatpush2.msra.mxu0 0.0
    %162 = vmatprep.subr.mxu0 0.0
    %163 = vmatpush2.msra.mxu0 0.0
    %164 = vmatprep.subr.mxu0 0.0
    %165 = vmatpush2.msra.mxu0 0.0
    %166 = vmatprep.subr.mxu0 0.0
    %167 = vmatpush2.msra.mxu0 0.0
    %168 = vmatprep.subr.mxu0 0.0
    %169 = vmatpush2.msra.mxu0 0.0
    %170 = vmatprep.subr.mxu0 0.0
    %171 = vmatpush2.msra.mxu0 0.0
    %172 = vmatprep.subr.mxu0 0.0
    %173 = vmatpush2.msra.mxu0 0.0
    %174 = vmatprep.subr.mxu0 0.0
    %175 = vmatpush2.msra.mxu0 0.0
    %176 = vmatprep.subr.mxu0 0.0
    %177 = vmatpush2.msra.mxu0 0.0
    %178 = vmatprep.subr.mxu0 0.0
    %179 = vmatpush2.msra.mxu0 0.0
    %180 = vmatprep.subr.mxu0 0.0
    %181 = vmatpush2.msra.mxu0 0.0
    %182 = vmatprep.subr.mxu0 0.0
    %183 = vmatpush2.msra.mxu0 0.0
    %184 = vmatprep.subr.mxu0 0.0
    %185 = vmatpush2.msra.mxu0 0.0
    %186 = vmatprep.subr.mxu0 0.0
    %187 = vmatpush2.msra.mxu0 0.0
    %188 = vmatprep.mubr.f32.mxu0 0.0
    %189 = vmatmul.mubr.f32.gmra.mxu0 %v68
    %v190 = vpop.f32.mrf.mxu0
    %v191 = vadd.f32 %v122, %v190
    %v192 = vpop.f32.mrf.mxu0
    %193 = vmatprep.mubr.f32.mxu0 0.0
    %194 = vmatmul.mubr.f32.gmra.mxu0 %v69
    %v195 = vpop.f32.mrf.mxu0
    %v196 = vadd.f32 %v122, %v195
    %v197 = vpop.f32.mrf.mxu0
    %198 = vmatprep.mubr.f32.mxu0 0.0
    %199 = vmatmul.mubr.f32.gmra.mxu0 %v70
    %v200 = vpop.f32.mrf.mxu0
    %v201 = vadd.f32 %v122, %v200
    %v202 = vpop.f32.mrf.mxu0
    %203 = vmatprep.mubr.f32.mxu0 0.0
    %204 = vmatmul.mubr.f32.gmra.mxu0 %v71
    %v205 = vpop.f32.mrf.mxu0
    %v206 = vadd.f32 %v122, %v205
    %v207 = vpop.f32.mrf.mxu0
    %208 = vmatprep.mubr.f32.mxu0 0.0
    %209 = vmatmul.mubr.f32.gmra.mxu0 %v72
    %v210 = vpop.f32.mrf.mxu0
    %v211 = vadd.f32 %v122, %v210
    %v212 = vpop.f32.mrf.mxu0
    %213 = vmatprep.mubr.f32.mxu0 0.0
    %214 = vmatmul.mubr.f32.gmra.mxu0 %v73
    %v215 = vpop.f32.mrf.mxu0
    %v216 = vadd.f32 %v122, %v215
    %v217 = vpop.f32.mrf.mxu0
    %218 = vmatprep.mubr.f32.mxu0 0.0
    %219 = vmatmul.mubr.f32.gmra.mxu0 %v74
    %v220 = vpop.f32.mrf.mxu0
    %v221 = vadd.f32 %v122, %v220
    %v222 = vpop.f32.mrf.mxu0
    %223 = vmatprep.mubr.f32.mxu0 0.0
    %224 = vmatmul.mubr.f32.gmra.mxu0 %v75
    %v225 = vpop.f32.mrf.mxu0
    %v226 = vadd.f32 %v122, %v225
    %v227 = vpop.f32.mrf.mxu0
    %228 = vmatprep.mubr.f32.mxu0 0.0
    %229 = vmatmul.mubr.f32.gmra.mxu0 %v76
    %v230 = vpop.f32.mrf.mxu0
    %v231 = vadd.f32 %v122, %v230
    %v232 = vpop.f32.mrf.mxu0
    %233 = vmatprep.mubr.f32.mxu0 0.0
    %234 = vmatmul.mubr.f32.gmra.mxu0 %v77
    %v235 = vpop.f32.mrf.mxu0
    %v236 = vadd.f32 %v122, %v235
    %v237 = vpop.f32.mrf.mxu0
    %238 = vmatprep.mubr.f32.mxu0 0.0
    %239 = vmatmul.mubr.f32.gmra.mxu0 %v78
    %v240 = vpop.f32.mrf.mxu0
    %v241 = vadd.f32 %v122, %v240
    %v242 = vpop.f32.mrf.mxu0
    %243 = vmatprep.mubr.f32.mxu0 0.0
    %244 = vmatmul.mubr.f32.gmra.mxu0 %v79
    %v245 = vpop.f32.mrf.mxu0
    %v246 = vadd.f32 %v122, %v245
    %v247 = vpop.f32.mrf.mxu0
    %248 = vmatprep.mubr.f32.mxu0 0.0
    %249 = vmatmul.mubr.f32.gmra.mxu0 %v80
    %v250 = vpop.f32.mrf.mxu0
    %v251 = vadd.f32 %v122, %v250
    %v252 = vpop.f32.mrf.mxu0
    %253 = vmatprep.mubr.f32.mxu0 0.0
    %254 = vmatmul.mubr.f32.gmra.mxu0 %v81
    %v255 = vpop.f32.mrf.mxu0
    %v256 = vadd.f32 %v122, %v255
    %v257 = vpop.f32.mrf.mxu0
    %258 = vmatprep.mubr.f32.mxu0 0.0
    %259 = vmatmul.mubr.f32.gmra.mxu0 %v82
    %v260 = vpop.f32.mrf.mxu0
    %v261 = vadd.f32 %v122, %v260
    %v262 = vpop.f32.mrf.mxu0
    %263 = vmatprep.mubr.f32.mxu0 0.0
    %264 = vmatmul.mubr.f32.gmra.mxu0 %v83
    %v265 = vpop.f32.mrf.mxu0
    %v266 = vadd.f32 %v122, %v265
    %v267 = vpop.f32.mrf.mxu0
    %268 = vdwg.mxu0
    %v269 = vld [vmem:[%s3] sm:$0x1]
    %v270 = vld [vmem:[%s4] sm:$0x1]
    %v271 = vadd.f32 %v191, %v196
    %v272 = vadd.f32 %v271, %v201
    %v273 = vadd.f32 %v272, %v206
    %v274 = vadd.f32 %v273, %v211
    %v275 = vadd.f32 %v274, %v216
    %v276 = vadd.f32 %v275, %v221
    %v277 = vadd.f32 %v276, %v226
    %v278 = vadd.f32 %v277, %v231
    %v279 = vadd.f32 %v278, %v236
    %v280 = vadd.f32 %v279, %v241
    %v281 = vadd.f32 %v280, %v246
    %v282 = vadd.f32 %v281, %v251
    %v283 = vadd.f32 %v282, %v256
    %v284 = vadd.f32 %v283, %v261
    %v285 = vadd.f32 %v284, %v266
    %v286 = vrot.slane %v285, 4
    %v287 = vadd.f32 %v285, %v286
    %v288 = vrot.slane %v287, 2
    %v289 = vadd.f32 %v287, %v288
    %v290 = vrot.slane %v289, 1
    %v291 = vadd.f32 %v289, %v290
    %v292 = vmul.f32 %v191, %v191
    %v293 = vmul.f32 %v196, %v196
    %v294 = vmul.f32 %v201, %v201
    %v295 = vmul.f32 %v206, %v206
    %v296 = vmul.f32 %v211, %v211
    %v297 = vmul.f32 %v216, %v216
    %v298 = vmul.f32 %v221, %v221
    %v299 = vmul.f32 %v226, %v226
    %v300 = vmul.f32 %v231, %v231
    %v301 = vmul.f32 %v236, %v236
    %v302 = vmul.f32 %v241, %v241
    %v303 = vmul.f32 %v246, %v246
    %v304 = vmul.f32 %v251, %v251
    %v305 = vmul.f32 %v256, %v256
    %v306 = vmul.f32 %v261, %v261
    %v307 = vmul.f32 %v266, %v266
    %v308 = vadd.f32 %v292, %v293
    %v309 = vadd.f32 %v308, %v294
    %v310 = vadd.f32 %v309, %v295
    %v311 = vadd.f32 %v310, %v296
    %v312 = vadd.f32 %v311, %v297
    %v313 = vadd.f32 %v312, %v298
    %v314 = vadd.f32 %v313, %v299
    %v315 = vadd.f32 %v314, %v300
    %v316 = vadd.f32 %v315, %v301
    %v317 = vadd.f32 %v316, %v302
    %v318 = vadd.f32 %v317, %v303
    %v319 = vadd.f32 %v318, %v304
    %v320 = vadd.f32 %v319, %v305
    %v321 = vadd.f32 %v320, %v306
    %v322 = vadd.f32 %v321, %v307
    %v323 = vrot.slane %v322, 4
    %v324 = vadd.f32 %v322, %v323
    %v325 = vrot.slane %v324, 2
    %v326 = vadd.f32 %v324, %v325
    %v327 = vrot.slane %v326, 1
    %v328 = vadd.f32 %v326, %v327
    %329 = vmatprep.subr.mxu0 0.0
    %330 = vmatpush1.msra.mxu0 %v100
    %331 = vmatprep.subr.mxu0 0.0
    %332 = vmatpush1.msra.mxu0 %v99
    %333 = vmatprep.subr.mxu0 0.0
    %334 = vmatpush1.msra.mxu0 %v98
    %335 = vmatprep.subr.mxu0 0.0
    %336 = vmatpush1.msra.mxu0 %v97
    %337 = vmatprep.subr.mxu0 0.0
    %338 = vmatpush1.msra.mxu0 %v96
    %339 = vmatprep.subr.mxu0 0.0
    %340 = vmatpush1.msra.mxu0 %v95
    %341 = vmatprep.subr.mxu0 0.0
    %342 = vmatpush1.msra.mxu0 %v94
    %343 = vmatprep.subr.mxu0 0.0
    %344 = vmatpush1.msra.mxu0 %v93
    %345 = vmatprep.subr.mxu0 0.0
    %346 = vmatpush1.msra.mxu0 %v92
    %347 = vmatprep.subr.mxu0 0.0
    %348 = vmatpush1.msra.mxu0 %v91
    %349 = vmatprep.subr.mxu0 0.0
    %350 = vmatpush1.msra.mxu0 %v90
    %351 = vmatprep.subr.mxu0 0.0
    %352 = vmatpush1.msra.mxu0 %v89
    %353 = vmatprep.subr.mxu0 0.0
    %354 = vmatpush1.msra.mxu0 %v88
    %355 = vmatprep.subr.mxu0 0.0
    %356 = vmatpush1.msra.mxu0 %v87
    %357 = vmatprep.subr.mxu0 0.0
    %358 = vmatpush1.msra.mxu0 %v86
    %359 = vmatprep.subr.mxu0 0.0
    %360 = vmatpush1.msra.mxu0 %v85
    %361 = vmatprep.subr.mxu0 0.0
    %362 = vmatpush2.msra.mxu0 0.0
    %363 = vmatprep.subr.mxu0 0.0
    %364 = vmatpush2.msra.mxu0 0.0
    %365 = vmatprep.subr.mxu0 0.0
    %366 = vmatpush2.msra.mxu0 0.0
    %367 = vmatprep.subr.mxu0 0.0
    %368 = vmatpush2.msra.mxu0 0.0
    %369 = vmatprep.subr.mxu0 0.0
    %370 = vmatpush2.msra.mxu0 0.0
    %371 = vmatprep.subr.mxu0 0.0
    %372 = vmatpush2.msra.mxu0 0.0
    %373 = vmatprep.subr.mxu0 0.0
    %374 = vmatpush2.msra.mxu0 0.0
    %375 = vmatprep.subr.mxu0 0.0
    %376 = vmatpush2.msra.mxu0 0.0
    %377 = vmatprep.subr.mxu0 0.0
    %378 = vmatpush2.msra.mxu0 0.0
    %379 = vmatprep.subr.mxu0 0.0
    %380 = vmatpush2.msra.mxu0 0.0
    %381 = vmatprep.subr.mxu0 0.0
    %382 = vmatpush2.msra.mxu0 0.0
    %383 = vmatprep.subr.mxu0 0.0
    %384 = vmatpush2.msra.mxu0 0.0
    %385 = vmatprep.subr.mxu0 0.0
    %386 = vmatpush2.msra.mxu0 0.0
    %387 = vmatprep.subr.mxu0 0.0
    %388 = vmatpush2.msra.mxu0 0.0
    %389 = vmatprep.subr.mxu0 0.0
    %390 = vmatpush2.msra.mxu0 0.0
    %391 = vmatprep.subr.mxu0 0.0
    %392 = vmatpush2.msra.mxu0 0.0
    %393 = vmatprep.mubr.f32.mxu0 0.0
    %394 = vmatmul.mubr.f32.gmra.mxu0 %v291
    %v395 = vpop.f32.mrf.mxu0
    %v396 = vadd.f32 0.0, %v395
    %v397 = vpop.f32.mrf.mxu0
    %398 = vdwg.mxu0
    %399 = vmatprep.subr.mxu0 0.0
    %400 = vmatpush1.msra.mxu0 %v100
    %401 = vmatprep.subr.mxu0 0.0
    %402 = vmatpush1.msra.mxu0 %v99
    %403 = vmatprep.subr.mxu0 0.0
    %404 = vmatpush1.msra.mxu0 %v98
    %405 = vmatprep.subr.mxu0 0.0
    %406 = vmatpush1.msra.mxu0 %v97
    %407 = vmatprep.subr.mxu0 0.0
    %408 = vmatpush1.msra.mxu0 %v96
    %409 = vmatprep.subr.mxu0 0.0
    %410 = vmatpush1.msra.mxu0 %v95
    %411 = vmatprep.subr.mxu0 0.0
    %412 = vmatpush1.msra.mxu0 %v94
    %413 = vmatprep.subr.mxu0 0.0
    %414 = vmatpush1.msra.mxu0 %v93
    %415 = vmatprep.subr.mxu0 0.0
    %416 = vmatpush1.msra.mxu0 %v92
    %417 = vmatprep.subr.mxu0 0.0
    %418 = vmatpush1.msra.mxu0 %v91
    %419 = vmatprep.subr.mxu0 0.0
    %420 = vmatpush1.msra.mxu0 %v90
    %421 = vmatprep.subr.mxu0 0.0
    %422 = vmatpush1.msra.mxu0 %v89
    %423 = vmatprep.subr.mxu0 0.0
    %424 = vmatpush1.msra.mxu0 %v88
    %425 = vmatprep.subr.mxu0 0.0
    %426 = vmatpush1.msra.mxu0 %v87
    %427 = vmatprep.subr.mxu0 0.0
    %428 = vmatpush1.msra.mxu0 %v86
    %429 = vmatprep.subr.mxu0 0.0
    %430 = vmatpush1.msra.mxu0 %v85
    %431 = vmatprep.subr.mxu0 0.0
    %432 = vmatpush2.msra.mxu0 0.0
    %433 = vmatprep.subr.mxu0 0.0
    %434 = vmatpush2.msra.mxu0 0.0
    %435 = vmatprep.subr.mxu0 0.0
    %436 = vmatpush2.msra.mxu0 0.0
    %437 = vmatprep.subr.mxu0 0.0
    %438 = vmatpush2.msra.mxu0 0.0
    %439 = vmatprep.subr.mxu0 0.0
    %440 = vmatpush2.msra.mxu0 0.0
    %441 = vmatprep.subr.mxu0 0.0
    %442 = vmatpush2.msra.mxu0 0.0
    %443 = vmatprep.subr.mxu0 0.0
    %444 = vmatpush2.msra.mxu0 0.0
    %445 = vmatprep.subr.mxu0 0.0
    %446 = vmatpush2.msra.mxu0 0.0
    %447 = vmatprep.subr.mxu0 0.0
    %448 = vmatpush2.msra.mxu0 0.0
    %449 = vmatprep.subr.mxu0 0.0
    %450 = vmatpush2.msra.mxu0 0.0
    %451 = vmatprep.subr.mxu0 0.0
    %452 = vmatpush2.msra.mxu0 0.0
    %453 = vmatprep.subr.mxu0 0.0
    %454 = vmatpush2.msra.mxu0 0.0
    %455 = vmatprep.subr.mxu0 0.0
    %456 = vmatpush2.msra.mxu0 0.0
    %457 = vmatprep.subr.mxu0 0.0
    %458 = vmatpush2.msra.mxu0 0.0
    %459 = vmatprep.subr.mxu0 0.0
    %460 = vmatpush2.msra.mxu0 0.0
    %461 = vmatprep.subr.mxu0 0.0
    %462 = vmatpush2.msra.mxu0 0.0
    %463 = vmatprep.mubr.f32.mxu0 0.0
    %464 = vmatmul.mubr.f32.gmra.mxu0 %v328
    %v465 = vpop.f32.mrf.mxu0
    %v466 = vadd.f32 0.0, %v465
    %v467 = vpop.f32.mrf.mxu0
    %468 = vdwg.mxu0
    %v469 = vmul.f32 %v396, %v396
    %v470 = vsub.f32 %v466, %v469
    %v471 = vadd.f32 %v470, 1e-05
    %v472 = vrsqrt.pop %v471
    %v473 = vmul.f32 %v472, %v269
    %v474 = vmul.f32 %v396, %v473
    %v475 = vsub.f32 %v270, %v474
    %v476 = vlaneseq
    %v477 = vshrl.u32 %v476, 7
    %v478 = vsub.s32 0, %v477
    %v479 = vrot.slane %v473, %v478
    %v480 = vmul.f32 %v191, %v479
    %v481 = vmul.f32 %v196, %v479
    %v482 = vmul.f32 %v201, %v479
    %v483 = vmul.f32 %v206, %v479
    %v484 = vmul.f32 %v211, %v479
    %v485 = vmul.f32 %v216, %v479
    %v486 = vmul.f32 %v221, %v479
    %v487 = vmul.f32 %v226, %v479
    %v488 = vmul.f32 %v231, %v479
    %v489 = vmul.f32 %v236, %v479
    %v490 = vmul.f32 %v241, %v479
    %v491 = vmul.f32 %v246, %v479
    %v492 = vmul.f32 %v251, %v479
    %v493 = vmul.f32 %v256, %v479
    %v494 = vmul.f32 %v261, %v479
    %v495 = vmul.f32 %v266, %v479
    %v497 = vlaneseq
    %v498 = vshrl.u32 %v497, 7
    %v499 = vsub.s32 0, %v498
    %v500 = vrot.slane %v475, %v499
    %v502 = vadd.f32 %v480, %v500
    %v503 = vadd.f32 %v481, %v500
    %v504 = vadd.f32 %v482, %v500
    %v505 = vadd.f32 %v483, %v500
    %v506 = vadd.f32 %v484, %v500
    %v507 = vadd.f32 %v485, %v500
    %v508 = vadd.f32 %v486, %v500
    %v509 = vadd.f32 %v487, %v500
    %v510 = vadd.f32 %v488, %v500
    %v511 = vadd.f32 %v489, %v500
    %v512 = vadd.f32 %v490, %v500
    %v513 = vadd.f32 %v491, %v500
    %v514 = vadd.f32 %v492, %v500
    %v515 = vadd.f32 %v493, %v500
    %v516 = vadd.f32 %v494, %v500
    %v517 = vadd.f32 %v495, %v500
    %vm518 = vcmp.ge.f32.partialorder %v502, 0.0
    %vm519 = vcmp.ge.f32.partialorder %v503, 0.0
    %vm520 = vcmp.ge.f32.partialorder %v504, 0.0
    %vm521 = vcmp.ge.f32.partialorder %v505, 0.0
    %vm522 = vcmp.ge.f32.partialorder %v506, 0.0
    %vm523 = vcmp.ge.f32.partialorder %v507, 0.0
    %vm524 = vcmp.ge.f32.partialorder %v508, 0.0
    %vm525 = vcmp.ge.f32.partialorder %v509, 0.0
    %vm526 = vcmp.ge.f32.partialorder %v510, 0.0
    %vm527 = vcmp.ge.f32.partialorder %v511, 0.0
    %vm528 = vcmp.ge.f32.partialorder %v512, 0.0
    %vm529 = vcmp.ge.f32.partialorder %v513, 0.0
    %vm530 = vcmp.ge.f32.partialorder %v514, 0.0
    %vm531 = vcmp.ge.f32.partialorder %v515, 0.0
    %vm532 = vcmp.ge.f32.partialorder %v516, 0.0
    %vm533 = vcmp.ge.f32.partialorder %v517, 0.0
    %v534 = vstv %s84
    %v535 = vmul.f32 %v534, %v502
    %v536 = vmul.f32 %v534, %v503
    %v537 = vmul.f32 %v534, %v504
    %v538 = vmul.f32 %v534, %v505
    %v539 = vmul.f32 %v534, %v506
    %v540 = vmul.f32 %v534, %v507
    %v541 = vmul.f32 %v534, %v508
    %v542 = vmul.f32 %v534, %v509
    %v543 = vmul.f32 %v534, %v510
    %v544 = vmul.f32 %v534, %v511
    %v545 = vmul.f32 %v534, %v512
    %v546 = vmul.f32 %v534, %v513
    %v547 = vmul.f32 %v534, %v514
    %v548 = vmul.f32 %v534, %v515
    %v549 = vmul.f32 %v534, %v516
    %v550 = vmul.f32 %v534, %v517
    %v551 = vsel %vm518, %v502, %v535
    %v552 = vsel %vm519, %v503, %v536
    %v553 = vsel %vm520, %v504, %v537
    %v554 = vsel %vm521, %v505, %v538
    %v555 = vsel %vm522, %v506, %v539
    %v556 = vsel %vm523, %v507, %v540
    %v557 = vsel %vm524, %v508, %v541
    %v558 = vsel %vm525, %v509, %v542
    %v559 = vsel %vm526, %v510, %v543
    %v560 = vsel %vm527, %v511, %v544
    %v561 = vsel %vm528, %v512, %v545
    %v562 = vsel %vm529, %v513, %v546
    %v563 = vsel %vm530, %v514, %v547
    %v564 = vsel %vm531, %v515, %v548
    %v565 = vsel %vm532, %v516, %v549
    %v566 = vsel %vm533, %v517, %v550
    %v567 = vld [vmem:[%s5] sm:$0xff]
    %v568 = vld [vmem:[%s5 + $0x8] sm:$0xff]
    %v569 = vld [vmem:[%s5 + $0x10] sm:$0xff]
    %v570 = vld [vmem:[%s5 + $0x18] sm:$0xff]
    %v571 = vld [vmem:[%s5 + $0x20] sm:$0xff]
    %v572 = vld [vmem:[%s5 + $0x28] sm:$0xff]
    %v573 = vld [vmem:[%s5 + $0x30] sm:$0xff]
    %v574 = vld [vmem:[%s5 + $0x38] sm:$0xff]
    %v575 = vld [vmem:[%s5 + $0x40] sm:$0xff]
    %v576 = vld [vmem:[%s5 + $0x48] sm:$0xff]
    %v577 = vld [vmem:[%s5 + $0x50] sm:$0xff]
    %v578 = vld [vmem:[%s5 + $0x58] sm:$0xff]
    %v579 = vld [vmem:[%s5 + $0x60] sm:$0xff]
    %v580 = vld [vmem:[%s5 + $0x68] sm:$0xff]
    %v581 = vld [vmem:[%s5 + $0x70] sm:$0xff]
    %v582 = vld [vmem:[%s5 + $0x78] sm:$0xff]
    %v583 = vld [vmem:[%s6] sm:$0x1]
    %v585 = vlaneseq
    %v586 = vshrl.u32 %v585, 7
    %v587 = vsub.s32 0, %v586
    %v588 = vrot.slane %v583, %v587
    %590 = vmatprep.subr.mxu0 0.0
    %591 = vmatpush1.msra.mxu0 %v582
    %592 = vmatprep.subr.mxu0 0.0
    %593 = vmatpush1.msra.mxu0 %v581
    %594 = vmatprep.subr.mxu0 0.0
    %595 = vmatpush1.msra.mxu0 %v580
    %596 = vmatprep.subr.mxu0 0.0
    %597 = vmatpush1.msra.mxu0 %v579
    %598 = vmatprep.subr.mxu0 0.0
    %599 = vmatpush1.msra.mxu0 %v578
    %600 = vmatprep.subr.mxu0 0.0
    %601 = vmatpush1.msra.mxu0 %v577
    %602 = vmatprep.subr.mxu0 0.0
    %603 = vmatpush1.msra.mxu0 %v576
    %604 = vmatprep.subr.mxu0 0.0
    %605 = vmatpush1.msra.mxu0 %v575
    %606 = vmatprep.subr.mxu0 0.0
    %607 = vmatpush1.msra.mxu0 %v574
    %608 = vmatprep.subr.mxu0 0.0
    %609 = vmatpush1.msra.mxu0 %v573
    %610 = vmatprep.subr.mxu0 0.0
    %611 = vmatpush1.msra.mxu0 %v572
    %612 = vmatprep.subr.mxu0 0.0
    %613 = vmatpush1.msra.mxu0 %v571
    %614 = vmatprep.subr.mxu0 0.0
    %615 = vmatpush1.msra.mxu0 %v570
    %616 = vmatprep.subr.mxu0 0.0
    %617 = vmatpush1.msra.mxu0 %v569
    %618 = vmatprep.subr.mxu0 0.0
    %619 = vmatpush1.msra.mxu0 %v568
    %620 = vmatprep.subr.mxu0 0.0
    %621 = vmatpush1.msra.mxu0 %v567
    %622 = vmatprep.subr.mxu0 0.0
    %623 = vmatpush2.msra.mxu0 0.0
    %624 = vmatprep.subr.mxu0 0.0
    %625 = vmatpush2.msra.mxu0 0.0
    %626 = vmatprep.subr.mxu0 0.0
    %627 = vmatpush2.msra.mxu0 0.0
    %628 = vmatprep.subr.mxu0 0.0
    %629 = vmatpush2.msra.mxu0 0.0
    %630 = vmatprep.subr.mxu0 0.0
    %631 = vmatpush2.msra.mxu0 0.0
    %632 = vmatprep.subr.mxu0 0.0
    %633 = vmatpush2.msra.mxu0 0.0
    %634 = vmatprep.subr.mxu0 0.0
    %635 = vmatpush2.msra.mxu0 0.0
    %636 = vmatprep.subr.mxu0 0.0
    %637 = vmatpush2.msra.mxu0 0.0
    %638 = vmatprep.subr.mxu0 0.0
    %639 = vmatpush2.msra.mxu0 0.0
    %640 = vmatprep.subr.mxu0 0.0
    %641 = vmatpush2.msra.mxu0 0.0
    %642 = vmatprep.subr.mxu0 0.0
    %643 = vmatpush2.msra.mxu0 0.0
    %644 = vmatprep.subr.mxu0 0.0
    %645 = vmatpush2.msra.mxu0 0.0
    %646 = vmatprep.subr.mxu0 0.0
    %647 = vmatpush2.msra.mxu0 0.0
    %648 = vmatprep.subr.mxu0 0.0
    %649 = vmatpush2.msra.mxu0 0.0
    %650 = vmatprep.subr.mxu0 0.0
    %651 = vmatpush2.msra.mxu0 0.0
    %652 = vmatprep.subr.mxu0 0.0
    %653 = vmatpush2.msra.mxu0 0.0
    %654 = vmatprep.mubr.f32.mxu0 0.0
    %655 = vmatmul.mubr.f32.gmra.mxu0 %v551
    %v656 = vpop.f32.mrf.mxu0
    %v657 = vadd.f32 %v588, %v656
    %v658 = vpop.f32.mrf.mxu0
    %659 = vmatprep.mubr.f32.mxu0 0.0
    %660 = vmatmul.mubr.f32.gmra.mxu0 %v552
    %v661 = vpop.f32.mrf.mxu0
    %v662 = vadd.f32 %v588, %v661
    %v663 = vpop.f32.mrf.mxu0
    %664 = vmatprep.mubr.f32.mxu0 0.0
    %665 = vmatmul.mubr.f32.gmra.mxu0 %v553
    %v666 = vpop.f32.mrf.mxu0
    %v667 = vadd.f32 %v588, %v666
    %v668 = vpop.f32.mrf.mxu0
    %669 = vmatprep.mubr.f32.mxu0 0.0
    %670 = vmatmul.mubr.f32.gmra.mxu0 %v554
    %v671 = vpop.f32.mrf.mxu0
    %v672 = vadd.f32 %v588, %v671
    %v673 = vpop.f32.mrf.mxu0
    %674 = vmatprep.mubr.f32.mxu0 0.0
    %675 = vmatmul.mubr.f32.gmra.mxu0 %v555
    %v676 = vpop.f32.mrf.mxu0
    %v677 = vadd.f32 %v588, %v676
    %v678 = vpop.f32.mrf.mxu0
    %679 = vmatprep.mubr.f32.mxu0 0.0
    %680 = vmatmul.mubr.f32.gmra.mxu0 %v556
    %v681 = vpop.f32.mrf.mxu0
    %v682 = vadd.f32 %v588, %v681
    %v683 = vpop.f32.mrf.mxu0
    %684 = vmatprep.mubr.f32.mxu0 0.0
    %685 = vmatmul.mubr.f32.gmra.mxu0 %v557
    %v686 = vpop.f32.mrf.mxu0
    %v687 = vadd.f32 %v588, %v686
    %v688 = vpop.f32.mrf.mxu0
    %689 = vmatprep.mubr.f32.mxu0 0.0
    %690 = vmatmul.mubr.f32.gmra.mxu0 %v558
    %v691 = vpop.f32.mrf.mxu0
    %v692 = vadd.f32 %v588, %v691
    %v693 = vpop.f32.mrf.mxu0
    %694 = vmatprep.mubr.f32.mxu0 0.0
    %695 = vmatmul.mubr.f32.gmra.mxu0 %v559
    %v696 = vpop.f32.mrf.mxu0
    %v697 = vadd.f32 %v588, %v696
    %v698 = vpop.f32.mrf.mxu0
    %699 = vmatprep.mubr.f32.mxu0 0.0
    %700 = vmatmul.mubr.f32.gmra.mxu0 %v560
    %v701 = vpop.f32.mrf.mxu0
    %v702 = vadd.f32 %v588, %v701
    %v703 = vpop.f32.mrf.mxu0
    %704 = vmatprep.mubr.f32.mxu0 0.0
    %705 = vmatmul.mubr.f32.gmra.mxu0 %v561
    %v706 = vpop.f32.mrf.mxu0
    %v707 = vadd.f32 %v588, %v706
    %v708 = vpop.f32.mrf.mxu0
    %709 = vmatprep.mubr.f32.mxu0 0.0
    %710 = vmatmul.mubr.f32.gmra.mxu0 %v562
    %v711 = vpop.f32.mrf.mxu0
    %v712 = vadd.f32 %v588, %v711
    %v713 = vpop.f32.mrf.mxu0
    %714 = vmatprep.mubr.f32.mxu0 0.0
    %715 = vmatmul.mubr.f32.gmra.mxu0 %v563
    %v716 = vpop.f32.mrf.mxu0
    %v717 = vadd.f32 %v588, %v716
    %v718 = vpop.f32.mrf.mxu0
    %719 = vmatprep.mubr.f32.mxu0 0.0
    %720 = vmatmul.mubr.f32.gmra.mxu0 %v564
    %v721 = vpop.f32.mrf.mxu0
    %v722 = vadd.f32 %v588, %v721
    %v723 = vpop.f32.mrf.mxu0
    %724 = vmatprep.mubr.f32.mxu0 0.0
    %725 = vmatmul.mubr.f32.gmra.mxu0 %v565
    %v726 = vpop.f32.mrf.mxu0
    %v727 = vadd.f32 %v588, %v726
    %v728 = vpop.f32.mrf.mxu0
    %729 = vmatprep.mubr.f32.mxu0 0.0
    %730 = vmatmul.mubr.f32.gmra.mxu0 %v566
    %v731 = vpop.f32.mrf.mxu0
    %v732 = vadd.f32 %v588, %v731
    %v733 = vpop.f32.mrf.mxu0
    %734 = vdwg.mxu0
    %v735 = vld [vmem:[%s7] sm:$0x1]
    %v736 = vld [vmem:[%s8] sm:$0x1]
    %v737 = vadd.f32 %v657, %v662
    %v738 = vadd.f32 %v737, %v667
    %v739 = vadd.f32 %v738, %v672
    %v740 = vadd.f32 %v739, %v677
    %v741 = vadd.f32 %v740, %v682
    %v742 = vadd.f32 %v741, %v687
    %v743 = vadd.f32 %v742, %v692
    %v744 = vadd.f32 %v743, %v697
    %v745 = vadd.f32 %v744, %v702
    %v746 = vadd.f32 %v745, %v707
    %v747 = vadd.f32 %v746, %v712
    %v748 = vadd.f32 %v747, %v717
    %v749 = vadd.f32 %v748, %v722
    %v750 = vadd.f32 %v749, %v727
    %v751 = vadd.f32 %v750, %v732
    %v752 = vrot.slane %v751, 4
    %v753 = vadd.f32 %v751, %v752
    %v754 = vrot.slane %v753, 2
    %v755 = vadd.f32 %v753, %v754
    %v756 = vrot.slane %v755, 1
    %v757 = vadd.f32 %v755, %v756
    %v758 = vmul.f32 %v657, %v657
    %v759 = vmul.f32 %v662, %v662
    %v760 = vmul.f32 %v667, %v667
    %v761 = vmul.f32 %v672, %v672
    %v762 = vmul.f32 %v677, %v677
    %v763 = vmul.f32 %v682, %v682
    %v764 = vmul.f32 %v687, %v687
    %v765 = vmul.f32 %v692, %v692
    %v766 = vmul.f32 %v697, %v697
    %v767 = vmul.f32 %v702, %v702
    %v768 = vmul.f32 %v707, %v707
    %v769 = vmul.f32 %v712, %v712
    %v770 = vmul.f32 %v717, %v717
    %v771 = vmul.f32 %v722, %v722
    %v772 = vmul.f32 %v727, %v727
    %v773 = vmul.f32 %v732, %v732
    %v774 = vadd.f32 %v758, %v759
    %v775 = vadd.f32 %v774, %v760
    %v776 = vadd.f32 %v775, %v761
    %v777 = vadd.f32 %v776, %v762
    %v778 = vadd.f32 %v777, %v763
    %v779 = vadd.f32 %v778, %v764
    %v780 = vadd.f32 %v779, %v765
    %v781 = vadd.f32 %v780, %v766
    %v782 = vadd.f32 %v781, %v767
    %v783 = vadd.f32 %v782, %v768
    %v784 = vadd.f32 %v783, %v769
    %v785 = vadd.f32 %v784, %v770
    %v786 = vadd.f32 %v785, %v771
    %v787 = vadd.f32 %v786, %v772
    %v788 = vadd.f32 %v787, %v773
    %v789 = vrot.slane %v788, 4
    %v790 = vadd.f32 %v788, %v789
    %v791 = vrot.slane %v790, 2
    %v792 = vadd.f32 %v790, %v791
    %v793 = vrot.slane %v792, 1
    %v794 = vadd.f32 %v792, %v793
    %795 = vmatprep.subr.mxu0 0.0
    %796 = vmatpush1.msra.mxu0 %v100
    %797 = vmatprep.subr.mxu0 0.0
    %798 = vmatpush1.msra.mxu0 %v99
    %799 = vmatprep.subr.mxu0 0.0
    %800 = vmatpush1.msra.mxu0 %v98
    %801 = vmatprep.subr.mxu0 0.0
    %802 = vmatpush1.msra.mxu0 %v97
    %803 = vmatprep.subr.mxu0 0.0
    %804 = vmatpush1.msra.mxu0 %v96
    %805 = vmatprep.subr.mxu0 0.0
    %806 = vmatpush1.msra.mxu0 %v95
    %807 = vmatprep.subr.mxu0 0.0
    %808 = vmatpush1.msra.mxu0 %v94
    %809 = vmatprep.subr.mxu0 0.0
    %810 = vmatpush1.msra.mxu0 %v93
    %811 = vmatprep.subr.mxu0 0.0
    %812 = vmatpush1.msra.mxu0 %v92
    %813 = vmatprep.subr.mxu0 0.0
    %814 = vmatpush1.msra.mxu0 %v91
    %815 = vmatprep.subr.mxu0 0.0
    %816 = vmatpush1.msra.mxu0 %v90
    %817 = vmatprep.subr.mxu0 0.0
    %818 = vmatpush1.msra.mxu0 %v89
    %819 = vmatprep.subr.mxu0 0.0
    %820 = vmatpush1.msra.mxu0 %v88
    %821 = vmatprep.subr.mxu0 0.0
    %822 = vmatpush1.msra.mxu0 %v87
    %823 = vmatprep.subr.mxu0 0.0
    %824 = vmatpush1.msra.mxu0 %v86
    %825 = vmatprep.subr.mxu0 0.0
    %826 = vmatpush1.msra.mxu0 %v85
    %827 = vmatprep.subr.mxu0 0.0
    %828 = vmatpush2.msra.mxu0 0.0
    %829 = vmatprep.subr.mxu0 0.0
    %830 = vmatpush2.msra.mxu0 0.0
    %831 = vmatprep.subr.mxu0 0.0
    %832 = vmatpush2.msra.mxu0 0.0
    %833 = vmatprep.subr.mxu0 0.0
    %834 = vmatpush2.msra.mxu0 0.0
    %835 = vmatprep.subr.mxu0 0.0
    %836 = vmatpush2.msra.mxu0 0.0
    %837 = vmatprep.subr.mxu0 0.0
    %838 = vmatpush2.msra.mxu0 0.0
    %839 = vmatprep.subr.mxu0 0.0
    %840 = vmatpush2.msra.mxu0 0.0
    %841 = vmatprep.subr.mxu0 0.0
    %842 = vmatpush2.msra.mxu0 0.0
    %843 = vmatprep.subr.mxu0 0.0
    %844 = vmatpush2.msra.mxu0 0.0
    %845 = vmatprep.subr.mxu0 0.0
    %846 = vmatpush2.msra.mxu0 0.0
    %847 = vmatprep.subr.mxu0 0.0
    %848 = vmatpush2.msra.mxu0 0.0
    %849 = vmatprep.subr.mxu0 0.0
    %850 = vmatpush2.msra.mxu0 0.0
    %851 = vmatprep.subr.mxu0 0.0
    %852 = vmatpush2.msra.mxu0 0.0
    %853 = vmatprep.subr.mxu0 0.0
    %854 = vmatpush2.msra.mxu0 0.0
    %855 = vmatprep.subr.mxu0 0.0
    %856 = vmatpush2.msra.mxu0 0.0
    %857 = vmatprep.subr.mxu0 0.0
    %858 = vmatpush2.msra.mxu0 0.0
    %859 = vmatprep.mubr.f32.mxu0 0.0
    %860 = vmatmul.mubr.f32.gmra.mxu0 %v757
    %v861 = vpop.f32.mrf.mxu0
    %v862 = vadd.f32 0.0, %v861
    %v863 = vpop.f32.mrf.mxu0
    %864 = vdwg.mxu0
    %865 = vmatprep.subr.mxu0 0.0
    %866 = vmatpush1.msra.mxu0 %v100
    %867 = vmatprep.subr.mxu0 0.0
    %868 = vmatpush1.msra.mxu0 %v99
    %869 = vmatprep.subr.mxu0 0.0
    %870 = vmatpush1.msra.mxu0 %v98
    %871 = vmatprep.subr.mxu0 0.0
    %872 = vmatpush1.msra.mxu0 %v97
    %873 = vmatprep.subr.mxu0 0.0
    %874 = vmatpush1.msra.mxu0 %v96
    %875 = vmatprep.subr.mxu0 0.0
    %876 = vmatpush1.msra.mxu0 %v95
    %877 = vmatprep.subr.mxu0 0.0
    %878 = vmatpush1.msra.mxu0 %v94
    %879 = vmatprep.subr.mxu0 0.0
    %880 = vmatpush1.msra.mxu0 %v93
    %881 = vmatprep.subr.mxu0 0.0
    %882 = vmatpush1.msra.mxu0 %v92
    %883 = vmatprep.subr.mxu0 0.0
    %884 = vmatpush1.msra.mxu0 %v91
    %885 = vmatprep.subr.mxu0 0.0
    %886 = vmatpush1.msra.mxu0 %v90
    %887 = vmatprep.subr.mxu0 0.0
    %888 = vmatpush1.msra.mxu0 %v89
    %889 = vmatprep.subr.mxu0 0.0
    %890 = vmatpush1.msra.mxu0 %v88
    %891 = vmatprep.subr.mxu0 0.0
    %892 = vmatpush1.msra.mxu0 %v87
    %893 = vmatprep.subr.mxu0 0.0
    %894 = vmatpush1.msra.mxu0 %v86
    %895 = vmatprep.subr.mxu0 0.0
    %896 = vmatpush1.msra.mxu0 %v85
    %897 = vmatprep.subr.mxu0 0.0
    %898 = vmatpush2.msra.mxu0 0.0
    %899 = vmatprep.subr.mxu0 0.0
    %900 = vmatpush2.msra.mxu0 0.0
    %901 = vmatprep.subr.mxu0 0.0
    %902 = vmatpush2.msra.mxu0 0.0
    %903 = vmatprep.subr.mxu0 0.0
    %904 = vmatpush2.msra.mxu0 0.0
    %905 = vmatprep.subr.mxu0 0.0
    %906 = vmatpush2.msra.mxu0 0.0
    %907 = vmatprep.subr.mxu0 0.0
    %908 = vmatpush2.msra.mxu0 0.0
    %909 = vmatprep.subr.mxu0 0.0
    %910 = vmatpush2.msra.mxu0 0.0
    %911 = vmatprep.subr.mxu0 0.0
    %912 = vmatpush2.msra.mxu0 0.0
    %913 = vmatprep.subr.mxu0 0.0
    %914 = vmatpush2.msra.mxu0 0.0
    %915 = vmatprep.subr.mxu0 0.0
    %916 = vmatpush2.msra.mxu0 0.0
    %917 = vmatprep.subr.mxu0 0.0
    %918 = vmatpush2.msra.mxu0 0.0
    %919 = vmatprep.subr.mxu0 0.0
    %920 = vmatpush2.msra.mxu0 0.0
    %921 = vmatprep.subr.mxu0 0.0
    %922 = vmatpush2.msra.mxu0 0.0
    %923 = vmatprep.subr.mxu0 0.0
    %924 = vmatpush2.msra.mxu0 0.0
    %925 = vmatprep.subr.mxu0 0.0
    %926 = vmatpush2.msra.mxu0 0.0
    %927 = vmatprep.subr.mxu0 0.0
    %928 = vmatpush2.msra.mxu0 0.0
    %929 = vmatprep.mubr.f32.mxu0 0.0
    %930 = vmatmul.mubr.f32.gmra.mxu0 %v794
    %v931 = vpop.f32.mrf.mxu0
    %v932 = vadd.f32 0.0, %v931
    %v933 = vpop.f32.mrf.mxu0
    %934 = vdwg.mxu0
    %v935 = vmul.f32 %v862, %v862
    %v936 = vsub.f32 %v932, %v935
    %v937 = vadd.f32 %v936, 1e-05
    %v938 = vrsqrt.pop %v937
    %v939 = vmul.f32 %v938, %v735
    %v940 = vmul.f32 %v862, %v939
    %v941 = vsub.f32 %v736, %v940
    %v942 = vlaneseq
    %v943 = vshrl.u32 %v942, 7
    %v944 = vsub.s32 0, %v943
    %v945 = vrot.slane %v939, %v944
    %v946 = vmul.f32 %v657, %v945
    %v947 = vmul.f32 %v662, %v945
    %v948 = vmul.f32 %v667, %v945
    %v949 = vmul.f32 %v672, %v945
    %v950 = vmul.f32 %v677, %v945
    %v951 = vmul.f32 %v682, %v945
    %v952 = vmul.f32 %v687, %v945
    %v953 = vmul.f32 %v692, %v945
    %v954 = vmul.f32 %v697, %v945
    %v955 = vmul.f32 %v702, %v945
    %v956 = vmul.f32 %v707, %v945
    %v957 = vmul.f32 %v712, %v945
    %v958 = vmul.f32 %v717, %v945
    %v959 = vmul.f32 %v722, %v945
    %v960 = vmul.f32 %v727, %v945
    %v961 = vmul.f32 %v732, %v945
    %v963 = vlaneseq
    %v964 = vshrl.u32 %v963, 7
    %v965 = vsub.s32 0, %v964
    %v966 = vrot.slane %v941, %v965
    %v968 = vadd.f32 %v946, %v966
    %v969 = vadd.f32 %v947, %v966
    %v970 = vadd.f32 %v948, %v966
    %v971 = vadd.f32 %v949, %v966
    %v972 = vadd.f32 %v950, %v966
    %v973 = vadd.f32 %v951, %v966
    %v974 = vadd.f32 %v952, %v966
    %v975 = vadd.f32 %v953, %v966
    %v976 = vadd.f32 %v954, %v966
    %v977 = vadd.f32 %v955, %v966
    %v978 = vadd.f32 %v956, %v966
    %v979 = vadd.f32 %v957, %v966
    %v980 = vadd.f32 %v958, %v966
    %v981 = vadd.f32 %v959, %v966
    %v982 = vadd.f32 %v960, %v966
    %v983 = vadd.f32 %v961, %v966
    %vm984 = vcmp.ge.f32.partialorder %v968, 0.0
    %vm985 = vcmp.ge.f32.partialorder %v969, 0.0
    %vm986 = vcmp.ge.f32.partialorder %v970, 0.0
    %vm987 = vcmp.ge.f32.partialorder %v971, 0.0
    %vm988 = vcmp.ge.f32.partialorder %v972, 0.0
    %vm989 = vcmp.ge.f32.partialorder %v973, 0.0
    %vm990 = vcmp.ge.f32.partialorder %v974, 0.0
    %vm991 = vcmp.ge.f32.partialorder %v975, 0.0
    %vm992 = vcmp.ge.f32.partialorder %v976, 0.0
    %vm993 = vcmp.ge.f32.partialorder %v977, 0.0
    %vm994 = vcmp.ge.f32.partialorder %v978, 0.0
    %vm995 = vcmp.ge.f32.partialorder %v979, 0.0
    %vm996 = vcmp.ge.f32.partialorder %v980, 0.0
    %vm997 = vcmp.ge.f32.partialorder %v981, 0.0
    %vm998 = vcmp.ge.f32.partialorder %v982, 0.0
    %vm999 = vcmp.ge.f32.partialorder %v983, 0.0
    %v1000 = vmul.f32 %v534, %v968
    %v1001 = vmul.f32 %v534, %v969
    %v1002 = vmul.f32 %v534, %v970
    %v1003 = vmul.f32 %v534, %v971
    %v1004 = vmul.f32 %v534, %v972
    %v1005 = vmul.f32 %v534, %v973
    %v1006 = vmul.f32 %v534, %v974
    %v1007 = vmul.f32 %v534, %v975
    %v1008 = vmul.f32 %v534, %v976
    %v1009 = vmul.f32 %v534, %v977
    %v1010 = vmul.f32 %v534, %v978
    %v1011 = vmul.f32 %v534, %v979
    %v1012 = vmul.f32 %v534, %v980
    %v1013 = vmul.f32 %v534, %v981
    %v1014 = vmul.f32 %v534, %v982
    %v1015 = vmul.f32 %v534, %v983
    %v1016 = vsel %vm984, %v968, %v1000
    %v1017 = vsel %vm985, %v969, %v1001
    %v1018 = vsel %vm986, %v970, %v1002
    %v1019 = vsel %vm987, %v971, %v1003
    %v1020 = vsel %vm988, %v972, %v1004
    %v1021 = vsel %vm989, %v973, %v1005
    %v1022 = vsel %vm990, %v974, %v1006
    %v1023 = vsel %vm991, %v975, %v1007
    %v1024 = vsel %vm992, %v976, %v1008
    %v1025 = vsel %vm993, %v977, %v1009
    %v1026 = vsel %vm994, %v978, %v1010
    %v1027 = vsel %vm995, %v979, %v1011
    %v1028 = vsel %vm996, %v980, %v1012
    %v1029 = vsel %vm997, %v981, %v1013
    %v1030 = vsel %vm998, %v982, %v1014
    %v1031 = vsel %vm999, %v983, %v1015
    %v1032 = vadd.f32 %v68, %v1016
    %v1033 = vadd.f32 %v69, %v1017
    %v1034 = vadd.f32 %v70, %v1018
    %v1035 = vadd.f32 %v71, %v1019
    %v1036 = vadd.f32 %v72, %v1020
    %v1037 = vadd.f32 %v73, %v1021
    %v1038 = vadd.f32 %v74, %v1022
    %v1039 = vadd.f32 %v75, %v1023
    %v1040 = vadd.f32 %v76, %v1024
    %v1041 = vadd.f32 %v77, %v1025
    %v1042 = vadd.f32 %v78, %v1026
    %v1043 = vadd.f32 %v79, %v1027
    %v1044 = vadd.f32 %v80, %v1028
    %v1045 = vadd.f32 %v81, %v1029
    %v1046 = vadd.f32 %v82, %v1030
    %v1047 = vadd.f32 %v83, %v1031
    %1048 = vst [vmem:[#allocation8] sm:$0xff] %v1032
    %1049 = vst [vmem:[#allocation8 + $0x8] sm:$0xff] %v1033
    %1050 = vst [vmem:[#allocation8 + $0x10] sm:$0xff] %v1034
    %1051 = vst [vmem:[#allocation8 + $0x18] sm:$0xff] %v1035
    %1052 = vst [vmem:[#allocation8 + $0x20] sm:$0xff] %v1036
    %1053 = vst [vmem:[#allocation8 + $0x28] sm:$0xff] %v1037
    %1054 = vst [vmem:[#allocation8 + $0x30] sm:$0xff] %v1038
    %1055 = vst [vmem:[#allocation8 + $0x38] sm:$0xff] %v1039
    %1056 = vst [vmem:[#allocation8 + $0x40] sm:$0xff] %v1040
    %1057 = vst [vmem:[#allocation8 + $0x48] sm:$0xff] %v1041
    %1058 = vst [vmem:[#allocation8 + $0x50] sm:$0xff] %v1042
    %1059 = vst [vmem:[#allocation8 + $0x58] sm:$0xff] %v1043
    %1060 = vst [vmem:[#allocation8 + $0x60] sm:$0xff] %v1044
    %1061 = vst [vmem:[#allocation8 + $0x68] sm:$0xff] %v1045
    %1062 = vst [vmem:[#allocation8 + $0x70] sm:$0xff] %v1046
    %1063 = vst [vmem:[#allocation8 + $0x78] sm:$0xff] %v1047
    // Predicated region
    $region54: #{tpu_custom_call.1} parent=1 // pred_check
      _
    $region55: #{tpu_custom_call.1} parent=1 // pred_check_branch
      %1065 = sbr.rel (0) target = $region57
    $region56: #{tpu_custom_call.1} parent=1 // pred_region
      %s1067 = ssub.s32 2048, 2048
      %1068 = vsyncadd [#allocation5], %s1067
      %s1069 = sshll.u32 [#allocation8], 4
      %s1070 = int_to_ptr.vmem [resolvable:$true] %s1069
      %1075 = dma.vmem_to_hbm [thread:$0]  %s1070, 2048, %s11, [#allocation5], 128, 128, 8
    $region57: #{tpu_custom_call.1} parent=1 // pred_fallthru
      _
    // Predicated region
    $region58: #{tpu_custom_call.1} parent=1 // pred_check
      _
    $region59: #{tpu_custom_call.1} parent=1 // pred_check_branch
      %1077 = sbr.rel (0) target = $region61
    $region60: #{tpu_custom_call.1} parent=1 // pred_region
      %1078 = dma.done [#allocation5], 2048
    $region61: #{tpu_custom_call.1} parent=1 // pred_fallthru
      _
    %1079 = vsyncpa [#allocation4], 1
    %1080 = vsyncpa [#allocation7], 1
    %1081 = vsyncpa [#allocation5], 1

</llo_original>
